<compile_context>
chip_gen: v5e
topology: v5e:2x2
jax: 0.10.0
libtpu: 0.0.40
codegen_flags: <defaults>
</compile_context>

<pallas_src>
import jax
import jax.numpy as jnp
from jax.experimental import pallas as pl
from jax.experimental.pallas import tpu as pltpu


# ----------------------------- Pallas kernels ------------------------------ #

def octconv_stats_kernel(a_ref, w_ref, y_ref, sum_ref, ssq_ref):
    """Pass 1: fused octave-conv matmul + per-tile BN partial statistics.

    a_ref  : (Kdim_pad, Lt)   bf16  im2col patch columns for this lane tile
    w_ref  : (Cout, Kdim_pad) bf16  fused [h2h | l2h] weights (resident)
    y_ref  : (Cout, Lt)       f32   un-normalized conv output tile
    sum_ref: (1, Cout, 1)     f32   per-tile per-channel sum
    ssq_ref: (1, Cout, 1)     f32   per-tile per-channel sum of squares
    """
    # MXU matmul, lane axis = N*HW tile (dense, multiple of 128), f32 acc.
    y = jnp.dot(w_ref[...], a_ref[...], preferred_element_type=jnp.float32)
    y_ref[...] = y
    # Per-tile partial statistics (reduced across tiles outside the kernel).
    sum_ref[0] = jnp.sum(y, axis=1, keepdims=True)
    ssq_ref[0] = jnp.sum(y * y, axis=1, keepdims=True)


def bn_apply_kernel(y_ref, scale_ref, shift_ref, o_ref):
    """Pass 2: per-channel affine y * scale + shift (trivially mem-bound)."""
    o_ref[...] = y_ref[...] * scale_ref[...] + shift_ref[...]


# ------------------------------- JAX glue ---------------------------------- #

def _im2col(x_pad, K, H, W):
    """[N, C, H+K-1, W+K-1] -> [N, C*K*K, H*W] (C major, (kh,kw) minor)."""
    N, C = x_pad.shape[0], x_pad.shape[1]
    cols = []
    for kh in range(K):
        for kw in range(K):
            cols.append(x_pad[:, :, kh:kh + H, kw:kw + W])   # [N, C, H, W]
    p = jnp.stack(cols, axis=2)                              # [N, C, K*K, H, W]
    return p.reshape(N, C * K * K, H * W)


def _round_up(x, m):
    return ((x + m - 1) // m) * m


def _pick_lane_tile(L, kdim_pad, cout, budget_bytes=24 << 20, max_tile=8192):
    """Largest multiple-of-128 divisor of L whose double-buffered tiles fit."""
    best = 128
    t = 128
    while t <= min(L, max_tile):
        if L % t == 0:
            need = 2 * kdim_pad * t * 2 + 2 * cout * t * 4
            if need <= budget_bytes:
                best = t
        t += 128
    return best


def conv_bn_a0_forward(x_h, x_l, params, *, K=3, padding=1, eps=1e-5):
    w_h2h = params["w_h2h"]          # [Cout, Cin_h, K, K]
    w_l2h = params["w_l2h"]          # [Cout, Cin_l, K, K]
    gamma = params["gamma"]          # [Cout]
    beta = params["beta"]            # [Cout]

    N, Cin_h, H, W = x_h.shape
    _, Cin_l, Hl, Wl = x_l.shape
    Cout = w_h2h.shape[0]
    HW = H * W
    L = N * HW                        # batch folded into the lane axis
    Kdim_h = Cin_h * K * K
    Kdim_l = Cin_l * K * K
    Kdim = Kdim_h + Kdim_l
    Kdim_pad = _round_up(Kdim, 128)   # MXU-friendly contraction dim

    assert L % 128 == 0, "N*H*W must be a multiple of 128"
    # TODO(synk): support ragged L via a padded final lane tile + masked stats.

    # --- XLA glue: zero-pad (Conv2d padding=1), im2col, low-freq x2 upsample.
    xp_h = jnp.pad(x_h, ((0, 0), (0, 0), (padding, padding), (padding, padding)))
    xp_l = jnp.pad(x_l, ((0, 0), (0, 0), (padding, padding), (padding, padding)))
    patches_h = _im2col(xp_h, K, H, W)            # [N, Kdim_h, H*W]
    patches_l = _im2col(xp_l, K, Hl, Wl)          # [N, Kdim_l, Hl*Wl]
    # Conv is linear & bias-free: nearest-upsampling the low-freq patch columns
    # before the matmul == nearest-upsampling conv_l2h(x_l) afterwards.
    patches_l = patches_l.reshape(N, Kdim_l, Hl, Wl)
    patches_l = jnp.repeat(jnp.repeat(patches_l, 2, axis=2), 2, axis=3)
    patches_l = patches_l.reshape(N, Kdim_l, HW)

    # a : (Kdim_pad, N*HW)   lane axis = batch x spatial (dense)
    a = jnp.concatenate([patches_h, patches_l], axis=1)        # [N, Kdim, HW]
    a = jnp.transpose(a, (1, 0, 2)).reshape(Kdim, L)
    a = jnp.pad(a, ((0, Kdim_pad - Kdim), (0, 0))).astype(jnp.bfloat16)

    # wm : (Cout, Kdim_pad)  fused [h2h | l2h] weights, zero-padded contraction
    wm = jnp.concatenate([w_h2h.reshape(Cout, Kdim_h),
                          w_l2h.reshape(Cout, Kdim_l)], axis=1)
    wm = jnp.pad(wm, ((0, 0), (0, Kdim_pad - Kdim))).astype(jnp.bfloat16)

    # --- Tiling / VMEM budget.
    Lt = _pick_lane_tile(L, Kdim_pad, Cout)
    num_tiles = L // Lt
    need = (2 * Kdim_pad * Lt * 2        # double-buffered `a` tiles (bf16)
            + 2 * Cout * Lt * 4          # double-buffered `y` tiles (f32)
            + 2 * Cout * Kdim_pad * 2    # resident weights
            + 4 * Cout * 4 * 2)          # stats blocks
    vmem_limit = int(min(100 << 20, max(8 << 20, 2 * need)))

    cost1 = pl.CostEstimate(
        flops=2 * Cout * Kdim_pad * L + 3 * Cout * L,
        transcendentals=0,
        bytes_accessed=(a.size * 2 + wm.size * 2 + Cout * L * 4
                        + 2 * num_tiles * Cout * 4))

    # --- Pass 1: conv matmul + per-tile BN partial statistics.
    conv_out, tile_sum, tile_ssq = pl.pallas_call(
        octconv_stats_kernel,
        out_shape=(
            jax.ShapeDtypeStruct((Cout, L), jnp.float32),
            jax.ShapeDtypeStruct((num_tiles, Cout, 1), jnp.float32),
            jax.ShapeDtypeStruct((num_tiles, Cout, 1), jnp.float32),
        ),
        grid=(num_tiles,),
        in_specs=[
            pl.BlockSpec((Kdim_pad, Lt), lambda t: (0, t)),    # patch columns
            pl.BlockSpec((Cout, Kdim_pad), lambda t: (0, 0)),  # resident weights
        ],
        out_specs=(
            pl.BlockSpec((Cout, Lt), lambda t: (0, t)),        # conv tile
            pl.BlockSpec((1, Cout, 1), lambda t: (t, 0, 0)),   # partial sum
            pl.BlockSpec((1, Cout, 1), lambda t: (t, 0, 0)),   # partial ssq
        ),
        compiler_params=pltpu.CompilerParams(
            dimension_semantics=("parallel",),                 # no carried state
            vmem_limit_bytes=vmem_limit),
        cost_estimate=cost1,
    )(a, wm)

    # --- Global BN statistics from per-tile partials (tiny, XLA-land).
    m_total = float(N * HW)
    sums = jnp.sum(tile_sum, axis=0)                           # (Cout, 1)
    ssqs = jnp.sum(tile_ssq, axis=0)                           # (Cout, 1)
    mean = sums / m_total
    var = jnp.maximum(ssqs / m_total - mean * mean, 0.0)       # clamp cancellation
    scale = gamma.reshape(Cout, 1).astype(jnp.float32) * jax.lax.rsqrt(var + eps)
    shift = beta.reshape(Cout, 1).astype(jnp.float32) - mean * scale

    # --- Pass 2: per-channel affine (mem-bound), same lane tiling.
    # TODO(synk): emit bf16 here if downstream accepts it (halves writeback).
    y = pl.pallas_call(
        bn_apply_kernel,
        out_shape=jax.ShapeDtypeStruct((Cout, L), jnp.float32),
        grid=(num_tiles,),
        in_specs=[
            pl.BlockSpec((Cout, Lt), lambda t: (0, t)),
            pl.BlockSpec((Cout, 1), lambda t: (0, 0)),
            pl.BlockSpec((Cout, 1), lambda t: (0, 0)),
        ],
        out_specs=pl.BlockSpec((Cout, Lt), lambda t: (0, t)),
        compiler_params=pltpu.CompilerParams(
            dimension_semantics=("parallel",),
            vmem_limit_bytes=vmem_limit),
    )(conv_out, scale, shift)

    # (Cout, N*HW) -> NCHW (tiny XLA transpose of the final result).
    out_h = jnp.transpose(y.reshape(Cout, N, HW), (1, 0, 2)).reshape(N, Cout, H, W)
    return out_h, None                                         # (x_h, x_l=None)


def reference_forward(x_h, x_l, params, *, padding=1, eps=1e-5):
    """Pure-JAX f32 reference of Conv_BNa0.forward (training-mode BN)."""
    dn = ("NCHW", "OIHW", "NCHW")
    pad = ((padding, padding), (padding, padding))
    y_h2h = jax.lax.conv_general_dilated(x_h, params["w_h2h"], (1, 1), pad,
                                         dimension_numbers=dn)
    y_l2h = jax.lax.conv_general_dilated(x_l, params["w_l2h"], (1, 1), pad,
                                         dimension_numbers=dn)
    y_l2h = jnp.repeat(jnp.repeat(y_l2h, 2, axis=2), 2, axis=3)   # nearest x2
    y = y_h2h + y_l2h
    mean = y.mean(axis=(0, 2, 3), keepdims=True)
    var = y.var(axis=(0, 2, 3), keepdims=True)                    # biased
    g = params["gamma"].reshape(1, -1, 1, 1)
    b = params["beta"].reshape(1, -1, 1, 1)
    return (y - mean) * jax.lax.rsqrt(var + eps) * g + b


# --------------------------------- main ------------------------------------ #

if __name__ == "__main__":
    # Module config: Conv_BNa0(in_channels=8, out_channels=8, kernel_size=3,
    #                          alpha_in=0.5, alpha_out=0.5, padding=1, bias=False)
    in_channels, out_channels, K, alpha_in, alpha_out, padding = 8, 8, 3, 0.5, 0.5, 1
    Cin_l = int(alpha_in * in_channels)                        # 4
    Cin_h = in_channels - Cin_l                                # 4
    Cout_h = out_channels - int(alpha_out * out_channels)      # 4 (bn_h channels)

    N, H, W = 2, 16, 16
    Hl, Wl = H // 2, W // 2

    key = jax.random.PRNGKey(0)
    k1, k2, k3, k4 = jax.random.split(key, 4)

    # Deterministic synthetic parameters (bias=False in the module).
    params = {
        "w_h2h": 0.1 * jax.random.normal(k1, (Cout_h, Cin_h, K, K), jnp.float32),
        "w_l2h": 0.1 * jax.random.normal(k2, (Cout_h, Cin_l, K, K), jnp.float32),
        "gamma": 1.0 + 0.1 * jnp.arange(Cout_h, dtype=jnp.float32),
        "beta": 0.05 * jnp.arange(Cout_h, dtype=jnp.float32),
    }

    x_h = jax.random.normal(k3, (N, Cin_h, H, W), jnp.float32)
    x_l = jax.random.normal(k4, (N, Cin_l, Hl, Wl), jnp.float32)

    out_h, out_l = conv_bn_a0_forward(x_h, x_l, params, K=K, padding=padding)
    out_h = jax.block_until_ready(out_h)
    assert out_l is None
    assert out_h.shape == (N, Cout_h, H, W)

    ref_h = jax.block_until_ready(
        reference_forward(x_h, x_l, params, padding=padding))
    # Kernel uses bf16 MXU inputs (f32 accumulation); reference is pure f32.
    if not jnp.allclose(out_h, ref_h, rtol=1e-2, atol=2e-2):
        err = jnp.max(jnp.abs(out_h - ref_h))
        raise AssertionError(f"Pallas Conv_BNa0 mismatch vs JAX reference (max err {err})")

    print("KERNEL_OK")
</pallas_src>

<mosaic_0001>
module attributes {stable_mosaic.version = 11 : i64} {
  func.func @octconv_stats_kernel(%arg0: i32, %arg1: memref<128x512xbf16, #tpu.memory_space<vmem>>, %arg2: memref<4x128xbf16, #tpu.memory_space<vmem>>, %arg3: memref<4x512xf32, #tpu.memory_space<vmem>>, %arg4: memref<1x4x1xf32, #tpu.memory_space<vmem>>, %arg5: memref<1x4x1xf32, #tpu.memory_space<vmem>>) attributes {dimension_semantics = [#tpu.dimension_semantics<parallel>], iteration_bounds = array<i64: 1>, scalar_prefetch = 0 : i64, scratch_operands = 0 : i64, tpu.core_type = #tpu.core_type<tc>, window_params = [{transform_indices = @transform_0, window_bounds = array<i64: 128, 512>}, {pipeline_mode = #tpu.pipeline_mode<synchronous>, transform_indices = @transform_1, window_bounds = array<i64: 4, 128>}, {transform_indices = @transform_2, window_bounds = array<i64: 4, 512>}, {transform_indices = @transform_3, window_bounds = array<i64: 1, 4, 1>}, {transform_indices = @transform_4, window_bounds = array<i64: 1, 4, 1>}]} {
    %c0 = arith.constant 0 : index
    %c0_0 = arith.constant 0 : index
    %0 = vector.load %arg2[%c0, %c0_0] : memref<4x128xbf16, #tpu.memory_space<vmem>>, vector<4x128xbf16>
    %c0_1 = arith.constant 0 : index
    %c0_2 = arith.constant 0 : index
    %1 = vector.load %arg1[%c0_1, %c0_2] : memref<128x512xbf16, #tpu.memory_space<vmem>>, vector<128x512xbf16>
    %cst = arith.constant dense<0.000000e+00> : vector<4x512xf32>
    %2 = tpu.matmul %0, %1, %cst {dimension_numbers = #tpu.dot_dimension_numbers<[1], [0], [0], [1], [0, 0, 1, 1], [], []>} : vector<4x128xbf16>, vector<128x512xbf16>, vector<4x512xf32> -> vector<4x512xf32>
    %c0_3 = arith.constant 0 : index
    %c0_4 = arith.constant 0 : index
    %3 = vector.load %arg3[%c0_3, %c0_4] : memref<4x512xf32, #tpu.memory_space<vmem>>, vector<4x512xf32>
    tpu.vector_store %arg3[%c0_3, %c0_4], %2 {strides = array<i32>} : memref<4x512xf32, #tpu.memory_space<vmem>>, vector<4x512xf32>,
    %cst_5 = arith.constant dense<0.000000e+00> : vector<4xf32>
    %4 = vector.multi_reduction <add>, %2, %cst_5 [1] : vector<4x512xf32> to vector<4xf32>
    %5 = vector.shape_cast %4 : vector<4xf32> to vector<4x1xf32>
    %c0_6 = arith.constant 0 : index
    %c0_7 = arith.constant 0 : index
    %c0_8 = arith.constant 0 : index
    %6 = vector.load %arg4[%c0_6, %c0_7, %c0_8] : memref<1x4x1xf32, #tpu.memory_space<vmem>>, vector<1x4x1xf32>
    %7 = vector.shape_cast %6 : vector<1x4x1xf32> to vector<4x1xf32>
    %8 = vector.shape_cast %5 : vector<4x1xf32> to vector<1x4x1xf32>
    tpu.vector_store %arg4[%c0_6, %c0_7, %c0_8], %8 {strides = array<i32>} : memref<1x4x1xf32, #tpu.memory_space<vmem>>, vector<1x4x1xf32>,
    %9 = arith.mulf %2, %2 : vector<4x512xf32>
    %cst_9 = arith.constant dense<0.000000e+00> : vector<4xf32>
    %10 = vector.multi_reduction <add>, %9, %cst_9 [1] : vector<4x512xf32> to vector<4xf32>
    %11 = vector.shape_cast %10 : vector<4xf32> to vector<4x1xf32>
    %c0_10 = arith.constant 0 : index
    %c0_11 = arith.constant 0 : index
    %c0_12 = arith.constant 0 : index
    %12 = vector.load %arg5[%c0_10, %c0_11, %c0_12] : memref<1x4x1xf32, #tpu.memory_space<vmem>>, vector<1x4x1xf32>
    %13 = vector.shape_cast %12 : vector<1x4x1xf32> to vector<4x1xf32>
    %14 = vector.shape_cast %11 : vector<4x1xf32> to vector<1x4x1xf32>
    tpu.vector_store %arg5[%c0_10, %c0_11, %c0_12], %14 {strides = array<i32>} : memref<1x4x1xf32, #tpu.memory_space<vmem>>, vector<1x4x1xf32>,
    return
  }
  func.func @transform_0(%arg0: i32) -> (i32, i32) {
    %c0_i32 = arith.constant 0 : i32
    %c0_i32_0 = arith.constant 0 : i32
    return %c0_i32, %arg0 : i32, i32
  }
  func.func @transform_1(%arg0: i32) -> (i32, i32) {
    %c0_i32 = arith.constant 0 : i32
    %c0_i32_0 = arith.constant 0 : i32
    %c0_i32_1 = arith.constant 0 : i32
    return %c0_i32, %c0_i32_0 : i32, i32
  }
  func.func @transform_2(%arg0: i32) -> (i32, i32) {
    %c0_i32 = arith.constant 0 : i32
    %c0_i32_0 = arith.constant 0 : i32
    return %c0_i32, %arg0 : i32, i32
  }
  func.func @transform_3(%arg0: i32) -> (i32, i32, i32) {
    %c0_i32 = arith.constant 0 : i32
    %c0_i32_0 = arith.constant 0 : i32
    %c0_i32_1 = arith.constant 0 : i32
    return %arg0, %c0_i32, %c0_i32_0 : i32, i32, i32
  }
  func.func @transform_4(%arg0: i32) -> (i32, i32, i32) {
    %c0_i32 = arith.constant 0 : i32
    %c0_i32_0 = arith.constant 0 : i32
    %c0_i32_1 = arith.constant 0 : i32
    return %arg0, %c0_i32, %c0_i32_0 : i32, i32, i32
  }
}

</mosaic_0001>

<llo_original>
// kernel: tpu_custom_call.1
$region0: #{tpu_custom_call.1}
  #allocation0 [shape = 'u32[]', space=smem, size = 0x4, offset = 0x4, fixed_abs, tag = 'smem constant byte address 0x4 - core index']
  #allocation1 [shape = 'u32[72,128]{1,0:T(1,128)}', space=vmem, size = 0x9000, scoped, tag = 'internal scratch']
  %s0 = inlined_call_operand.hbm [shape: bf16[128,512], index: 0, kind: input, shape index: {}]
  %s1 = inlined_call_operand.hbm [shape: bf16[4,128], index: 1, kind: input, shape index: {}]
  %s2 = inlined_call_operand.hbm [shape: f32[4,512], index: 2, kind: output, shape index: {0}]
  %s3 = inlined_call_operand.vmem [shape: f32[1,4,1], index: 3, kind: output, shape index: {1}]
  %s4 = inlined_call_operand.vmem [shape: f32[1,4,1], index: 4, kind: output, shape index: {2}]
  %5 = xla_tuple %s2, %s3, %s4
  %s6 = sld [smem:[#allocation0]]
  $region42: #{tpu_custom_call.1} parent=0
    _
  %s8 = ssub.s32 1, %s6
  %s9 = scalar_select 0, %s8, %s6
  $region1: #{tpu_custom_call.1} parent=0
    #allocation2 [shape = 'u8[131072]{0}', space=vmem, size = 0x20000, scoped, tag = 'input window, operand 0, single buffered']
    #allocation3 [shape = 's32[1]{0}', space=sflag, size = 0x4, scoped, tag = 'scoped memory for tpu_custom_call.1']
    #allocation4 [shape = 's32[1]{0}', space=sflag, size = 0x4, scoped, tag = 'scoped memory for tpu_custom_call.1']
    #allocation5 [shape = 'u8[1024]{0}', space=vmem, size = 0x400, scoped, tag = 'input window, operand 1, single buffered']
    #allocation6 [shape = 's32[1]{0}', space=sflag, size = 0x4, scoped, tag = 'scoped memory for tpu_custom_call.1']
    #allocation7 [shape = 'u8[8192]{0}', space=vmem, size = 0x2000, scoped, tag = 'output window, operand 0, single buffered']
    %10 = vsyncpa [#allocation3], 0
    %11 = vsyncpa [#allocation6], 0
    %12 = vsyncpa [#allocation4], 0
    // Predicated region
    $region2: #{tpu_custom_call.1} parent=1 // pred_check
      _
    $region3: #{tpu_custom_call.1} parent=1 // pred_check_branch
      %14 = sbr.rel (0) target = $region5
    $region4: #{tpu_custom_call.1} parent=1 // pred_region
      %16 = vsyncadd [#allocation3], 0
      %s17 = sshll.u32 %s0, 4
      %s18 = int_to_ptr.hbm [resolvable:$true] %s17
      %s19 = sshll.u32 [#allocation2], 4
      %s20 = int_to_ptr.vmem [resolvable:$true] %s19
      %25 = dma.hbm_to_vmem [thread:$0]  %s18, 4096, %s20, [#allocation3], 256, 256, 16
    $region5: #{tpu_custom_call.1} parent=1 // pred_fallthru
      _
    // Predicated region
    $region6: #{tpu_custom_call.1} parent=1 // pred_check
      _
    $region7: #{tpu_custom_call.1} parent=1 // pred_check_branch
      %27 = sbr.rel (0) target = $region9
    $region8: #{tpu_custom_call.1} parent=1 // pred_region
      %29 = vsyncadd [#allocation6], 0
      %s31 = sshll.u32 %s1, 4
      %s32 = int_to_ptr.hbm [resolvable:$true] %s31
      %s33 = sshll.u32 [#allocation5], 4
      %s34 = int_to_ptr.vmem [resolvable:$true] %s33
      %36 = dma.hbm_to_vmem [thread:$0]  %s32, 32, %s34, [#allocation6]
    $region9: #{tpu_custom_call.1} parent=1 // pred_fallthru
      _
    // Predicated region
    $region10: #{tpu_custom_call.1} parent=1 // pred_check
      _
    $region11: #{tpu_custom_call.1} parent=1 // pred_check_branch
      %38 = sbr.rel (0) target = $region13
    $region12: #{tpu_custom_call.1} parent=1 // pred_region
      %40 = dma.done [#allocation3], 4096
    $region13: #{tpu_custom_call.1} parent=1 // pred_fallthru
      _
    // Predicated region
    $region14: #{tpu_custom_call.1} parent=1 // pred_check
      _
    $region15: #{tpu_custom_call.1} parent=1 // pred_check_branch
      %42 = sbr.rel (0) target = $region17
    $region16: #{tpu_custom_call.1} parent=1 // pred_region
      %44 = dma.done [#allocation6], 32
    $region17: #{tpu_custom_call.1} parent=1 // pred_fallthru
      _
    %v45 = vld [vmem:[#allocation5] sm:$0x3]
    %v46 = vld [vmem:[#allocation2] sm:$0xff]
    %v47 = vld [vmem:[#allocation2 + $0x8] sm:$0xff]
    %v48 = vld [vmem:[#allocation2 + $0x10] sm:$0xff]
    %v49 = vld [vmem:[#allocation2 + $0x18] sm:$0xff]
    %v50 = vld [vmem:[#allocation2 + $0x20] sm:$0xff]
    %v51 = vld [vmem:[#allocation2 + $0x28] sm:$0xff]
    %v52 = vld [vmem:[#allocation2 + $0x30] sm:$0xff]
    %v53 = vld [vmem:[#allocation2 + $0x38] sm:$0xff]
    %v54 = vld [vmem:[#allocation2 + $0x40] sm:$0xff]
    %v55 = vld [vmem:[#allocation2 + $0x48] sm:$0xff]
    %v56 = vld [vmem:[#allocation2 + $0x50] sm:$0xff]
    %v57 = vld [vmem:[#allocation2 + $0x58] sm:$0xff]
    %v58 = vld [vmem:[#allocation2 + $0x60] sm:$0xff]
    %v59 = vld [vmem:[#allocation2 + $0x68] sm:$0xff]
    %v60 = vld [vmem:[#allocation2 + $0x70] sm:$0xff]
    %v61 = vld [vmem:[#allocation2 + $0x78] sm:$0xff]
    %v62 = vld [vmem:[#allocation2 + $0x80] sm:$0xff]
    %v63 = vld [vmem:[#allocation2 + $0x88] sm:$0xff]
    %v64 = vld [vmem:[#allocation2 + $0x90] sm:$0xff]
    %v65 = vld [vmem:[#allocation2 + $0x98] sm:$0xff]
    %v66 = vld [vmem:[#allocation2 + $0xa0] sm:$0xff]
    %v67 = vld [vmem:[#allocation2 + $0xa8] sm:$0xff]
    %v68 = vld [vmem:[#allocation2 + $0xb0] sm:$0xff]
    %v69 = vld [vmem:[#allocation2 + $0xb8] sm:$0xff]
    %v70 = vld [vmem:[#allocation2 + $0xc0] sm:$0xff]
    %v71 = vld [vmem:[#allocation2 + $0xc8] sm:$0xff]
    %v72 = vld [vmem:[#allocation2 + $0xd0] sm:$0xff]
    %v73 = vld [vmem:[#allocation2 + $0xd8] sm:$0xff]
    %v74 = vld [vmem:[#allocation2 + $0xe0] sm:$0xff]
    %v75 = vld [vmem:[#allocation2 + $0xe8] sm:$0xff]
    %v76 = vld [vmem:[#allocation2 + $0xf0] sm:$0xff]
    %v77 = vld [vmem:[#allocation2 + $0xf8] sm:$0xff]
    %v110 = vunpack.c.l.b16 %v46
    %v111 = vunpack.c.h.b16 %v46
    %v112 = vunpack.c.l.b16 %v47
    %v113 = vunpack.c.h.b16 %v47
    %v114 = vunpack.c.l.b16 %v48
    %v115 = vunpack.c.h.b16 %v48
    %v116 = vunpack.c.l.b16 %v49
    %v117 = vunpack.c.h.b16 %v49
    %v118 = vunpack.c.l.b16 %v50
    %v119 = vunpack.c.h.b16 %v50
    %v120 = vunpack.c.l.b16 %v51
    %v121 = vunpack.c.h.b16 %v51
    %v122 = vunpack.c.l.b16 %v52
    %v123 = vunpack.c.h.b16 %v52
    %v124 = vunpack.c.l.b16 %v53
    %v125 = vunpack.c.h.b16 %v53
    %v126 = vunpack.c.l.b16 %v54
    %v127 = vunpack.c.h.b16 %v54
    %v128 = vunpack.c.l.b16 %v55
    %v129 = vunpack.c.h.b16 %v55
    %v130 = vunpack.c.l.b16 %v56
    %v131 = vunpack.c.h.b16 %v56
    %v132 = vunpack.c.l.b16 %v57
    %v133 = vunpack.c.h.b16 %v57
    %v134 = vunpack.c.l.b16 %v58
    %v135 = vunpack.c.h.b16 %v58
    %v136 = vunpack.c.l.b16 %v59
    %v137 = vunpack.c.h.b16 %v59
    %v138 = vunpack.c.l.b16 %v60
    %v139 = vunpack.c.h.b16 %v60
    %v140 = vunpack.c.l.b16 %v61
    %v141 = vunpack.c.h.b16 %v61
    %v142 = vunpack.c.l.b16 %v62
    %v143 = vunpack.c.h.b16 %v62
    %v144 = vunpack.c.l.b16 %v63
    %v145 = vunpack.c.h.b16 %v63
    %v146 = vunpack.c.l.b16 %v64
    %v147 = vunpack.c.h.b16 %v64
    %v148 = vunpack.c.l.b16 %v65
    %v149 = vunpack.c.h.b16 %v65
    %v150 = vunpack.c.l.b16 %v66
    %v151 = vunpack.c.h.b16 %v66
    %v152 = vunpack.c.l.b16 %v67
    %v153 = vunpack.c.h.b16 %v67
    %v154 = vunpack.c.l.b16 %v68
    %v155 = vunpack.c.h.b16 %v68
    %v156 = vunpack.c.l.b16 %v69
    %v157 = vunpack.c.h.b16 %v69
    %v158 = vunpack.c.l.b16 %v70
    %v159 = vunpack.c.h.b16 %v70
    %v160 = vunpack.c.l.b16 %v71
    %v161 = vunpack.c.h.b16 %v71
    %v162 = vunpack.c.l.b16 %v72
    %v163 = vunpack.c.h.b16 %v72
    %v164 = vunpack.c.l.b16 %v73
    %v165 = vunpack.c.h.b16 %v73
    %v166 = vunpack.c.l.b16 %v74
    %v167 = vunpack.c.h.b16 %v74
    %v168 = vunpack.c.l.b16 %v75
    %v169 = vunpack.c.h.b16 %v75
    %v170 = vunpack.c.l.b16 %v76
    %v171 = vunpack.c.h.b16 %v76
    %v172 = vunpack.c.l.b16 %v77
    %v173 = vunpack.c.h.b16 %v77
    %v174 = vpack.c.b16 %v114, %v110
    %v175 = vpack.c.b16 %v115, %v111
    %v176 = vpack.c.b16 %v116, %v112
    %v177 = vpack.c.b16 %v117, %v113
    %v178 = vpack.c.b16 %v122, %v118
    %v179 = vpack.c.b16 %v123, %v119
    %v180 = vpack.c.b16 %v124, %v120
    %v181 = vpack.c.b16 %v125, %v121
    %v182 = vpack.c.b16 %v130, %v126
    %v183 = vpack.c.b16 %v131, %v127
    %v184 = vpack.c.b16 %v132, %v128
    %v185 = vpack.c.b16 %v133, %v129
    %v186 = vpack.c.b16 %v138, %v134
    %v187 = vpack.c.b16 %v139, %v135
    %v188 = vpack.c.b16 %v140, %v136
    %v189 = vpack.c.b16 %v141, %v137
    %v190 = vpack.c.b16 %v146, %v142
    %v191 = vpack.c.b16 %v147, %v143
    %v192 = vpack.c.b16 %v148, %v144
    %v193 = vpack.c.b16 %v149, %v145
    %v194 = vpack.c.b16 %v154, %v150
    %v195 = vpack.c.b16 %v155, %v151
    %v196 = vpack.c.b16 %v156, %v152
    %v197 = vpack.c.b16 %v157, %v153
    %v198 = vpack.c.b16 %v162, %v158
    %v199 = vpack.c.b16 %v163, %v159
    %v200 = vpack.c.b16 %v164, %v160
    %v201 = vpack.c.b16 %v165, %v161
    %v202 = vpack.c.b16 %v170, %v166
    %v203 = vpack.c.b16 %v171, %v167
    %v204 = vpack.c.b16 %v172, %v168
    %v205 = vpack.c.b16 %v173, %v169
    %238 = vmatpush.bf16.msra.mxu0 %v202
    %239 = vmatpush.bf16.msra.mxu0 %v198
    %240 = vmatpush.bf16.msra.mxu0 %v194
    %241 = vmatpush.bf16.msra.mxu0 %v190
    %242 = vmatpush.bf16.msra.mxu0 %v186
    %243 = vmatpush.bf16.msra.mxu0 %v182
    %244 = vmatpush.bf16.msra.mxu0 %v178
    %245 = vmatpush.bf16.msra.mxu0 %v174
    %246 = vmatmul.bf16.gmra.mxu0 %v45
    %v247 = vpop.f32.mrf.mxu0
    %v248 = vadd.f32 0.0, %v247
    %v249 = vpop.f32.mrf.mxu0
    %250 = vdwg.mxu0
    %251 = vmatpush.bf16.msra.mxu0 %v203
    %252 = vmatpush.bf16.msra.mxu0 %v199
    %253 = vmatpush.bf16.msra.mxu0 %v195
    %254 = vmatpush.bf16.msra.mxu0 %v191
    %255 = vmatpush.bf16.msra.mxu0 %v187
    %256 = vmatpush.bf16.msra.mxu0 %v183
    %257 = vmatpush.bf16.msra.mxu0 %v179
    %258 = vmatpush.bf16.msra.mxu0 %v175
    %259 = vmatmul.bf16.gmra.mxu0 %v45
    %v260 = vpop.f32.mrf.mxu0
    %v261 = vadd.f32 0.0, %v260
    %v262 = vpop.f32.mrf.mxu0
    %263 = vdwg.mxu0
    %264 = vmatpush.bf16.msra.mxu0 %v204
    %265 = vmatpush.bf16.msra.mxu0 %v200
    %266 = vmatpush.bf16.msra.mxu0 %v196
    %267 = vmatpush.bf16.msra.mxu0 %v192
    %268 = vmatpush.bf16.msra.mxu0 %v188
    %269 = vmatpush.bf16.msra.mxu0 %v184
    %270 = vmatpush.bf16.msra.mxu0 %v180
    %271 = vmatpush.bf16.msra.mxu0 %v176
    %272 = vmatmul.bf16.gmra.mxu0 %v45
    %v273 = vpop.f32.mrf.mxu0
    %v274 = vadd.f32 0.0, %v273
    %v275 = vpop.f32.mrf.mxu0
    %276 = vdwg.mxu0
    %277 = vmatpush.bf16.msra.mxu0 %v205
    %278 = vmatpush.bf16.msra.mxu0 %v201
    %279 = vmatpush.bf16.msra.mxu0 %v197
    %280 = vmatpush.bf16.msra.mxu0 %v193
    %281 = vmatpush.bf16.msra.mxu0 %v189
    %282 = vmatpush.bf16.msra.mxu0 %v185
    %283 = vmatpush.bf16.msra.mxu0 %v181
    %284 = vmatpush.bf16.msra.mxu0 %v177
    %285 = vmatmul.bf16.gmra.mxu0 %v45
    %v286 = vpop.f32.mrf.mxu0
    %v287 = vadd.f32 0.0, %v286
    %v288 = vpop.f32.mrf.mxu0
    %289 = vdwg.mxu0
    %v294 = vrot.slane %v261, 4
    %v295 = vrot.slane %v287, 4
    %vm296 = vcmask 1043456
    %v297 = vsel %vm296, %v248, %v294
    %v298 = vsel %vm296, %v274, %v295
    %301 = vst [vmem:[#allocation7] sm:$0xff] %v297
    %302 = vst [vmem:[#allocation7 + $0x8] sm:$0xff] %v298
    %v303 = vsel %vm296, %v248, 0.0
    %v304 = vsel %vm296, %v261, 0.0
    %v305 = vadd.f32 %v303, %v304
    %v306 = vsel %vm296, %v274, 0.0
    %v307 = vadd.f32 %v305, %v306
    %v308 = vsel %vm296, %v287, 0.0
    %v309 = vadd.f32 %v307, %v308
    %310 = vadd.xlane.f32.xlu0 %v309
    %v311 = vpop.xlane.xlu0 %310
    %vm312 = vcmask 3072
    %313 = vst.msk [vmem:[%s3] sm:$0xf] %vm312, %v311
    %v314 = vmul.f32 %v248, %v248
    %v315 = vmul.f32 %v261, %v261
    %v316 = vmul.f32 %v274, %v274
    %v317 = vmul.f32 %v287, %v287
    %v318 = vsel %vm296, %v314, 0.0
    %v319 = vsel %vm296, %v315, 0.0
    %v320 = vadd.f32 %v318, %v319
    %v321 = vsel %vm296, %v316, 0.0
    %v322 = vadd.f32 %v320, %v321
    %v323 = vsel %vm296, %v317, 0.0
    %v324 = vadd.f32 %v322, %v323
    %325 = vadd.xlane.f32.xlu0 %v324
    %v326 = vpop.xlane.xlu0 %325
    %327 = vst.msk [vmem:[%s4] sm:$0xf] %vm312, %v326
    // Predicated region
    $region18: #{tpu_custom_call.1} parent=1 // pred_check
      _
    $region19: #{tpu_custom_call.1} parent=1 // pred_check_branch
      %329 = sbr.rel (0) target = $region21
    $region20: #{tpu_custom_call.1} parent=1 // pred_region
      %331 = vsyncadd [#allocation4], 0
      %s333 = sshll.u32 [#allocation7], 4
      %s334 = int_to_ptr.vmem [resolvable:$true] %s333
      %s335 = sshll.u32 %s2, 4
      %s336 = int_to_ptr.hbm [resolvable:$true] %s335
      %338 = dma.vmem_to_hbm [thread:$0]  %s334, 256, %s336, [#allocation4]
    $region21: #{tpu_custom_call.1} parent=1 // pred_fallthru
      _
    // Predicated region
    $region22: #{tpu_custom_call.1} parent=1 // pred_check
      _
    $region23: #{tpu_custom_call.1} parent=1 // pred_check_branch
      %340 = sbr.rel (0) target = $region25
    $region24: #{tpu_custom_call.1} parent=1 // pred_region
      _
    $region25: #{tpu_custom_call.1} parent=1 // pred_fallthru
      _
    // Predicated region
    $region26: #{tpu_custom_call.1} parent=1 // pred_check
      _
    $region27: #{tpu_custom_call.1} parent=1 // pred_check_branch
      %342 = sbr.rel (0) target = $region29
    $region28: #{tpu_custom_call.1} parent=1 // pred_region
      _
    $region29: #{tpu_custom_call.1} parent=1 // pred_fallthru
      _
    // Predicated region
    $region30: #{tpu_custom_call.1} parent=1 // pred_check
      _
    $region31: #{tpu_custom_call.1} parent=1 // pred_check_branch
      %344 = sbr.rel (0) target = $region33
    $region32: #{tpu_custom_call.1} parent=1 // pred_region
      %346 = dma.done [#allocation4], 256
    $region33: #{tpu_custom_call.1} parent=1 // pred_fallthru
      _
    // Predicated region
    $region34: #{tpu_custom_call.1} parent=1 // pred_check
      _
    $region35: #{tpu_custom_call.1} parent=1 // pred_check_branch
      %348 = sbr.rel (0) target = $region37
    $region36: #{tpu_custom_call.1} parent=1 // pred_region
      _
    $region37: #{tpu_custom_call.1} parent=1 // pred_fallthru
      _
    // Predicated region
    $region38: #{tpu_custom_call.1} parent=1 // pred_check
      _
    $region39: #{tpu_custom_call.1} parent=1 // pred_check_branch
      %350 = sbr.rel (0) target = $region41
    $region40: #{tpu_custom_call.1} parent=1 // pred_region
      _
    $region41: #{tpu_custom_call.1} parent=1 // pred_fallthru
      _
    %351 = vsyncpa [#allocation3], 1
    %352 = vsyncpa [#allocation6], 1
    %353 = vsyncpa [#allocation4], 1

</llo_original>
